<compile_context>
chip_gen: v5e
topology: v5e:2x2
jax: 0.10.0
libtpu: 0.0.40
codegen_flags: <defaults>
</compile_context>

<pallas_src>
import math
from dataclasses import dataclass
from typing import Callable

import jax
import jax.numpy as jnp
from jax.experimental import pallas as pl
from jax.experimental.pallas import tpu as pltpu


@dataclass(frozen=True)
class SymFn:
    name: str
    n_inputs: int
    fn: Callable  # jnp implementation (mirrors the .torch() method)


# Deterministic, in-script function set (typical EQL primitives).
FUNCTIONS = (
    SymFn("identity", 1, lambda a: a),
    SymFn("square",   1, lambda a: a * a),
    SymFn("sin",      1, lambda a: jnp.sin(a)),
    SymFn("sigmoid",  1, lambda a: jax.nn.sigmoid(a)),
    SymFn("product",  2, lambda a, b: a * b),
    SymFn("plus",     2, lambda a, b: a + b),
)


def layer_dims(functions):
    n_single = sum(1 for f in functions if f.n_inputs == 1)
    n_double = sum(1 for f in functions if f.n_inputs == 2)
    n_functions = len(functions)
    n_inputs_func = n_single + 2 * n_double
    return n_single, n_double, n_functions, n_inputs_func


def init_symbolic_layer_weights(key, input_size, functions):
    """Replicates nn.init.kaiming_uniform_(W, a=sqrt(5)) on a
    (input_size, n_inputs_func) tensor: fan_in = n_inputs_func,
    bound = 1/sqrt(fan_in), Uniform(-bound, bound)."""
    _, _, _, n_inputs_func = layer_dims(functions)
    bound = 1.0 / math.sqrt(n_inputs_func)
    return jax.random.uniform(
        key, (input_size, n_inputs_func), jnp.float32, minval=-bound, maxval=bound
    )


def symbolic_layer_forward(x, weights, functions=FUNCTIONS, use_bf16_matmul=False):
    single_fns = [f for f in functions if f.n_inputs == 1]
    double_fns = [f for f in functions if f.n_inputs == 2]
    n_single, n_double, n_functions, n_inputs_func = layer_dims(functions)
    B, D = x.shape
    assert weights.shape == (D, n_inputs_func)
    # As in PyTorch, row indexing y[i_in] requires batch >= n_inputs_func.
    assert B >= n_inputs_func, "need batch >= n_inputs_func for the row indexing"

    out_dtype = x.dtype

    # Only rows 0..n_inputs_func-1 of x are live; slice (and pad to a multiple
    # of 8 sublanes) before the pallas_call so the kernel never touches the
    # dead (B - n_inputs_func) rows.
    n_rows = max(8, ((n_inputs_func + 7) // 8) * 8)
    x_used = x[: min(B, n_rows)]
    if x_used.shape[0] < n_rows:
        x_used = jnp.pad(x_used, ((0, n_rows - x_used.shape[0]), (0, 0)))

    if use_bf16_matmul:
        # bf16 MXU operands (v6e/v7x win); accumulation stays f32 in-kernel.
        x_in = x_used.astype(jnp.bfloat16)
        w_in = weights.astype(jnp.bfloat16)
    else:
        x_in = x_used
        w_in = weights

    def kernel(x_ref, w_ref, o_ref):
        # MXU matmul over only the live rows; accumulate in f32.
        y = jnp.dot(x_ref[...], w_ref[...], preferred_element_type=jnp.float32)

        # --- single-input functions -> output rows [0, n_single) ---
        # Apply each fn to the whole y tile (it fits in one vreg) and merge
        # with an elementwise row-iota mask: no sublane slices, no concat.
        if n_single > 0:
            row = jax.lax.broadcasted_iota(jnp.int32, y.shape, 0)
            merged = single_fns[n_single - 1].fn(y)
            for r in range(n_single - 2, -1, -1):
                merged = jnp.where(row == r, single_fns[r].fn(y), merged)
            o_ref[0:n_single, :] = merged[0:n_single, :].astype(o_ref.dtype)

        # --- double-input functions -> output rows [n_single, n_functions) ---
        # Write each result row straight into o_ref (no concatenate).
        for j, f in enumerate(double_fns):
            src = n_single + 2 * j
            res = f.fn(y[src:src + 1, :], y[src + 1:src + 2, :])
            o_ref[n_single + j:n_single + j + 1, :] = res.astype(o_ref.dtype)

    # TODO(synk): for a real multi-layer SymbolicNet, fuse the consumer layer
    # into this kernel (keep y / the output in VMEM scratch) so the tiny
    # lane-sparse (n_functions, n_inputs_func) result never round-trips HBM.
    return pl.pallas_call(
        kernel,
        grid=(1,),
        in_specs=[
            pl.BlockSpec((n_rows, D), lambda i: (0, 0)),
            pl.BlockSpec((D, n_inputs_func), lambda i: (0, 0)),
        ],
        out_specs=pl.BlockSpec((n_functions, n_inputs_func), lambda i: (0, 0)),
        out_shape=jax.ShapeDtypeStruct((n_functions, n_inputs_func), out_dtype),
        compiler_params=pltpu.CompilerParams(dimension_semantics=("arbitrary",)),
    )(x_in, w_in)


def symbolic_layer_reference(x, weights, functions=FUNCTIONS):
    """Pure-JAX reference with the exact literal PyTorch semantics."""
    single_fns = [f for f in functions if f.n_inputs == 1]
    double_fns = [f for f in functions if f.n_inputs == 2]
    n_single, _, n_functions, _ = layer_dims(functions)
    y = jnp.matmul(x, weights)
    out, i_out, i_in = [], 0, 0
    while i_out < n_single:
        out.append(single_fns[i_out].fn(y[i_in]))
        i_out += 1
        i_in += 1
    while i_out < n_functions:
        out.append(double_fns[i_out - n_single].fn(y[i_in], y[i_in + 1]))
        i_out += 1
        i_in += 2
    return jnp.stack(out)


if __name__ == "__main__":
    key = jax.random.PRNGKey(0)
    kx, kw = jax.random.split(key)

    input_size = 32
    _, _, n_functions, n_inputs_func = layer_dims(FUNCTIONS)  # 6, 8
    batch = 16  # > n_inputs_func: the extra rows are dead and never DMA'd

    weights = init_symbolic_layer_weights(kw, input_size, FUNCTIONS)
    x = jax.random.normal(kx, (batch, input_size), dtype=jnp.float32)

    out = symbolic_layer_forward(x, weights)
    out = jax.block_until_ready(out)

    ref = symbolic_layer_reference(x, weights)
    assert out.shape == (n_functions, n_inputs_func), out.shape
    assert out.dtype == ref.dtype
    assert jnp.allclose(out, ref, atol=1e-5, rtol=1e-5), "mismatch vs reference"

    print("KERNEL_OK")
</pallas_src>

<mosaic_0001>
module attributes {stable_mosaic.version = 11 : i64} {
  func.func @kernel(%arg0: i32, %arg1: memref<8x32xf32, #tpu.memory_space<vmem>>, %arg2: memref<32x8xf32, #tpu.memory_space<vmem>>, %arg3: memref<6x8xf32, #tpu.memory_space<vmem>>) attributes {dimension_semantics = [#tpu.dimension_semantics<arbitrary>], iteration_bounds = array<i64: 1>, scalar_prefetch = 0 : i64, scratch_operands = 0 : i64, tpu.core_type = #tpu.core_type<tc>, window_params = [{pipeline_mode = #tpu.pipeline_mode<synchronous>, transform_indices = @transform_0, window_bounds = array<i64: 8, 32>}, {pipeline_mode = #tpu.pipeline_mode<synchronous>, transform_indices = @transform_1, window_bounds = array<i64: 32, 8>}, {pipeline_mode = #tpu.pipeline_mode<synchronous>, transform_indices = @transform_2, window_bounds = array<i64: 6, 8>}]} {
    %c0 = arith.constant 0 : index
    %c0_0 = arith.constant 0 : index
    %0 = vector.load %arg1[%c0, %c0_0] : memref<8x32xf32, #tpu.memory_space<vmem>>, vector<8x32xf32>
    %c0_1 = arith.constant 0 : index
    %c0_2 = arith.constant 0 : index
    %1 = vector.load %arg2[%c0_1, %c0_2] : memref<32x8xf32, #tpu.memory_space<vmem>>, vector<32x8xf32>
    %cst = arith.constant dense<0.000000e+00> : vector<8x8xf32>
    %2 = tpu.matmul %0, %1, %cst {dimension_numbers = #tpu.dot_dimension_numbers<[1], [0], [0], [1], [0, 0, 1, 1], [], []>} : vector<8x32xf32>, vector<32x8xf32>, vector<8x8xf32> -> vector<8x8xf32>
    %3 = tpu.iota {dimensions = array<i32: 0>} : vector<8x8xi32>
    %4 = arith.negf %2 : vector<8x8xf32>
    %5 = math.exp %4 : vector<8x8xf32>
    %cst_3 = arith.constant 1.000000e+00 : f32
    %6 = vector.broadcast %cst_3 : f32 to vector<8x8xf32>
    %7 = arith.addf %6, %5 : vector<8x8xf32>
    %8 = arith.divf %6, %7 : vector<8x8xf32>
    %c2_i32 = arith.constant 2 : i32
    %9 = vector.broadcast %c2_i32 : i32 to vector<8x8xi32>
    %10 = arith.cmpi eq, %3, %9 : vector<8x8xi32>
    %11 = math.sin %2 : vector<8x8xf32>
    %12 = arith.select %10, %11, %8 : vector<8x8xi1>, vector<8x8xf32>
    %c1_i32 = arith.constant 1 : i32
    %13 = vector.broadcast %c1_i32 : i32 to vector<8x8xi32>
    %14 = arith.cmpi eq, %3, %13 : vector<8x8xi32>
    %15 = arith.mulf %2, %2 : vector<8x8xf32>
    %16 = arith.select %14, %15, %12 : vector<8x8xi1>, vector<8x8xf32>
    %c0_i32 = arith.constant 0 : i32
    %17 = vector.broadcast %c0_i32 : i32 to vector<8x8xi32>
    %18 = arith.cmpi eq, %3, %17 : vector<8x8xi32>
    %19 = arith.select %18, %2, %16 : vector<8x8xi1>, vector<8x8xf32>
    %20 = vector.extract_strided_slice %19 {offsets = [0, 0], sizes = [4, 8], strides = [1, 1]} : vector<8x8xf32> to vector<4x8xf32>
    %c0_4 = arith.constant 0 : index
    %c0_5 = arith.constant 0 : index
    %21 = vector.load %arg3[%c0_4, %c0_5] : memref<6x8xf32, #tpu.memory_space<vmem>>, vector<4x8xf32>
    tpu.vector_store %arg3[%c0_4, %c0_5], %20 {strides = array<i32>} : memref<6x8xf32, #tpu.memory_space<vmem>>, vector<4x8xf32>,
    %22 = vector.extract_strided_slice %2 {offsets = [4, 0], sizes = [1, 8], strides = [1, 1]} : vector<8x8xf32> to vector<1x8xf32>
    %23 = vector.extract_strided_slice %2 {offsets = [5, 0], sizes = [1, 8], strides = [1, 1]} : vector<8x8xf32> to vector<1x8xf32>
    %24 = arith.mulf %22, %23 : vector<1x8xf32>
    %c4 = arith.constant 4 : index
    %c0_6 = arith.constant 0 : index
    %25 = vector.load %arg3[%c4, %c0_6] : memref<6x8xf32, #tpu.memory_space<vmem>>, vector<1x8xf32>
    tpu.vector_store %arg3[%c4, %c0_6], %24 {strides = array<i32>} : memref<6x8xf32, #tpu.memory_space<vmem>>, vector<1x8xf32>,
    %26 = vector.extract_strided_slice %2 {offsets = [6, 0], sizes = [1, 8], strides = [1, 1]} : vector<8x8xf32> to vector<1x8xf32>
    %27 = vector.extract_strided_slice %2 {offsets = [7, 0], sizes = [1, 8], strides = [1, 1]} : vector<8x8xf32> to vector<1x8xf32>
    %28 = arith.addf %26, %27 : vector<1x8xf32>
    %c5 = arith.constant 5 : index
    %c0_7 = arith.constant 0 : index
    %29 = vector.load %arg3[%c5, %c0_7] : memref<6x8xf32, #tpu.memory_space<vmem>>, vector<1x8xf32>
    tpu.vector_store %arg3[%c5, %c0_7], %28 {strides = array<i32>} : memref<6x8xf32, #tpu.memory_space<vmem>>, vector<1x8xf32>,
    return
  }
  func.func @transform_0(%arg0: i32) -> (i32, i32) {
    %c0_i32 = arith.constant 0 : i32
    %c0_i32_0 = arith.constant 0 : i32
    %c0_i32_1 = arith.constant 0 : i32
    return %c0_i32, %c0_i32_0 : i32, i32
  }
  func.func @transform_1(%arg0: i32) -> (i32, i32) {
    %c0_i32 = arith.constant 0 : i32
    %c0_i32_0 = arith.constant 0 : i32
    %c0_i32_1 = arith.constant 0 : i32
    return %c0_i32, %c0_i32_0 : i32, i32
  }
  func.func @transform_2(%arg0: i32) -> (i32, i32) {
    %c0_i32 = arith.constant 0 : i32
    %c0_i32_0 = arith.constant 0 : i32
    %c0_i32_1 = arith.constant 0 : i32
    return %c0_i32, %c0_i32_0 : i32, i32
  }
}

</mosaic_0001>

<llo_original>
// kernel: tpu_custom_call.1
$region0: #{tpu_custom_call.1}
  #allocation0 [shape = 'u32[]', space=smem, size = 0x4, offset = 0x4, fixed_abs, tag = 'smem constant byte address 0x4 - core index']
  #allocation1 [shape = 'u32[72,128]{1,0:T(1,128)}', space=vmem, size = 0x9000, scoped, tag = 'internal scratch']
  %s0 = inlined_call_operand.vmem [shape: f32[8,32], index: 0, kind: input, shape index: {}]
  %s1 = inlined_call_operand.vmem [shape: f32[32,8], index: 1, kind: input, shape index: {}]
  %s2 = inlined_call_operand.hbm [shape: f32[6,8], index: 2, kind: output, shape index: {}]
  %s3 = sld [smem:[#allocation0]]
  $region18: #{tpu_custom_call.1} parent=0
    _
  %s5 = ssub.s32 1, %s3
  %s6 = scalar_select 0, %s5, %s3
  $region1: #{tpu_custom_call.1} parent=0
    #allocation2 [shape = 'u8[4096]{0}', space=vmem, size = 0x1000, scoped, tag = 'output window, operand 0, single buffered']
    #allocation3 [shape = 's32[1]{0}', space=sflag, size = 0x4, scoped, tag = 'scoped memory for tpu_custom_call.1']
    %7 = vsyncpa [#allocation3], 0
    // Predicated region
    $region2: #{tpu_custom_call.1} parent=1 // pred_check
      _
    $region3: #{tpu_custom_call.1} parent=1 // pred_check_branch
      %9 = sbr.rel (0) target = $region5
    $region4: #{tpu_custom_call.1} parent=1 // pred_region
      _
    $region5: #{tpu_custom_call.1} parent=1 // pred_fallthru
      _
    // Predicated region
    $region6: #{tpu_custom_call.1} parent=1 // pred_check
      _
    $region7: #{tpu_custom_call.1} parent=1 // pred_check_branch
      %11 = sbr.rel (0) target = $region9
    $region8: #{tpu_custom_call.1} parent=1 // pred_region
      _
    $region9: #{tpu_custom_call.1} parent=1 // pred_fallthru
      _
    %v12 = vld [vmem:[%s0] sm:$0xff]
    %v13 = vld [vmem:[%s1] sm:$0xff]
    %v14 = vld [vmem:[%s1 + $0x8] sm:$0xff]
    %v15 = vld [vmem:[%s1 + $0x10] sm:$0xff]
    %v16 = vld [vmem:[%s1 + $0x18] sm:$0xff]
    %vm17 = vcmask 261120
    %v19 = vsel %vm17, %v12, 0
    %21 = vmatpush.msra.mxu0 0.0
    %22 = vmatpush.msra.mxu0 0.0
    %23 = vmatpush.msra.mxu0 0.0
    %24 = vmatpush.msra.mxu0 0.0
    %25 = vmatpush.msra.mxu0 0.0
    %26 = vmatpush.msra.mxu0 0.0
    %27 = vmatpush.msra.mxu0 0.0
    %28 = vmatpush.msra.mxu0 0.0
    %29 = vmatpush.msra.mxu0 0.0
    %30 = vmatpush.msra.mxu0 0.0
    %31 = vmatpush.msra.mxu0 0.0
    %32 = vmatpush.msra.mxu0 0.0
    %33 = vmatpush.msra.mxu0 %v16
    %34 = vmatpush.msra.mxu0 %v15
    %35 = vmatpush.msra.mxu0 %v14
    %36 = vmatpush.msra.mxu0 %v13
    %37 = vmatmul.f32.gmra.mxu0 %v19
    %v38 = vpop.f32.mrf.mxu0
    %v39 = vadd.f32 0.0, %v38
    %40 = vdwg.mxu0
    %v41 = vlaneseq
    %v42 = vshrl.u32 %v41, 7
    %v43 = vxor.u32 %v39, 2147483648
    %v44 = vmul.f32 %v43, 1.442695
    %v45 = vpow.pop %v44
    %v46 = vadd.f32 %v45, 1.0
    %v47 = vrcp.pop %v46
    %v48 = vmul.f32 %v46, %v47
    %v49 = vsub.f32 1.0, %v48
    %v50 = vmul.f32 %v47, %v49
    %v51 = vadd.f32 %v47, %v50
    %vm52 = vweird.f32 %v46
    %vm53 = vweird.f32 %v47
    %vm54 = vmor %vm52, %vm53
    %v55 = vsel %vm54, %v47, %v51
    %v56 = vand.u32 2147483647, %v46
    %vm57 = vcmp.eq.f32.partialorder %v56, 8.507059e+37
    %v58 = vand.u32 %v46, 2147483648
    %v59 = vor.u32 1.1754944e-38, %v58
    %v60 = vsel %vm57, %v59, %v55
    %v61 = vmul.f32 1.0, %v60
    %vm62 = vcmp.eq.s32.totalorder %v42, 2
    %v63 = vand.u32 2147483647, %v39
    %vm64 = vcmp.le.f32.partialorder %v63, 0.7853982
    %vm65 = vcmp.lt.s32.totalorder %v39, 0
    %v66 = vand.u32 %v39, 2139095040
    %v67 = vshrl.u32 %v66, 23
    %v68 = vsub.s32 %v67, 127
    %v69 = vand.u32 2147483647, %v39
    %v70 = vand.u32 %v69, 8388607
    %v71 = vor.u32 %v70, 8388608
    %v72 = vsub.s32 0, %v71
    %v73 = vadd.s32 %v68, 1
    %vm74 = vcmp.gt.s32.totalorder %v73, 0
    %v75 = vsel %vm74, %v73, 0
    %v76 = vshrl.u32 %v75, 5
    %v77 = vand.u32 %v75, 31
    %v78 = vsub.s32 32, %v77
    %v79 = vshrl.u32 683565275, %v78
    %v80 = vshll.u32 683565275, %v77
    %v81 = vshrl.u32 2475754826, %v78
    %v82 = vor.u32 %v80, %v81
    %v83 = vshll.u32 2475754826, %v77
    %v84 = vshrl.u32 2131351028, %v78
    %v85 = vor.u32 %v83, %v84
    %v86 = vshll.u32 2131351028, %v77
    %v87 = vshrl.u32 2102212464, %v78
    %v88 = vor.u32 %v86, %v87
    %v89 = vshll.u32 2102212464, %v77
    %v90 = vshrl.u32 920167782, %v78
    %v91 = vor.u32 %v89, %v90
    %v92 = vshll.u32 920167782, %v77
    %v93 = vshrl.u32 1326507024, %v78
    %v94 = vor.u32 %v92, %v93
    %vm95 = vcmp.lt.s32.totalorder %v76, 1
    %vm96 = vcmp.lt.s32.totalorder %v76, 2
    %vm97 = vcmp.lt.s32.totalorder %v76, 3
    %vm98 = vcmp.lt.s32.totalorder %v76, 4
    %v99 = vsel %vm95, %v79, %v82
    %v100 = vsel %vm98, %v88, 2102212464
    %v101 = vsel %vm97, %v85, %v100
    %v102 = vsel %vm96, %v99, %v101
    %v103 = vsel %vm95, %v82, %v85
    %v104 = vsel %vm98, %v91, 920167782
    %v105 = vsel %vm97, %v88, %v104
    %v106 = vsel %vm96, %v103, %v105
    %v107 = vsel %vm95, %v85, %v88
    %v108 = vsel %vm98, %v94, 1326507024
    %v109 = vsel %vm97, %v91, %v108
    %v110 = vsel %vm96, %v107, %v109
    %v111 = vshll.u32 %v71, 8
    %v112 = vand.u32 %v111, 65535
    %v113 = vshrl.u32 %v111, 16
    %v114 = vand.u32 %v110, 65535
    %v115 = vshrl.u32 %v110, 16
    %v116 = vmul.u32 %v112, %v114
    %v117 = vmul.u32 %v112, %v115
    %v118 = vmul.u32 %v113, %v114
    %v119 = vmul.u32 %v113, %v115
    %v120 = vshll.u32 %v117, 16
    %v121 = vshrl.u32 %v117, 16
    %v122 = vshll.u32 %v118, 16
    %v123 = vshrl.u32 %v118, 16
    %vm124 = vc.u32 %v116, %v120
    %v125 = vsel %vm124, 1, 0
    %v126 = vadd.s32 %v116, %v120
    %v127 = vadd.s32 %v119, %v125
    %vm128 = vc.u32 %v126, %v122
    %v129 = vsel %vm128, 1, 0
    %v130 = vadd.s32 %v126, %v122
    %v131 = vadd.s32 %v127, %v129
    %v132 = vadd.s32 %v131, %v121
    %v133 = vadd.s32 %v132, %v123
    %v134 = vand.u32 %v111, 65535
    %v135 = vshrl.u32 %v111, 16
    %v136 = vand.u32 %v106, 65535
    %v137 = vshrl.u32 %v106, 16
    %v138 = vmul.u32 %v134, %v136
    %v139 = vmul.u32 %v134, %v137
    %v140 = vmul.u32 %v135, %v136
    %v141 = vmul.u32 %v135, %v137
    %v142 = vshll.u32 %v139, 16
    %v143 = vshrl.u32 %v139, 16
    %v144 = vshll.u32 %v140, 16
    %v145 = vshrl.u32 %v140, 16
    %vm146 = vc.u32 %v138, %v142
    %v147 = vsel %vm146, 1, 0
    %v148 = vadd.s32 %v138, %v142
    %v149 = vadd.s32 %v141, %v147
    %vm150 = vc.u32 %v148, %v144
    %v151 = vsel %vm150, 1, 0
    %v152 = vadd.s32 %v148, %v144
    %v153 = vadd.s32 %v149, %v151
    %v154 = vadd.s32 %v153, %v143
    %v155 = vadd.s32 %v154, %v145
    %v156 = vmul.u32 %v111, %v102
    %v157 = vadd.s32 %v133, %v152
    %vm158 = vc.u32 %v133, %v152
    %v159 = vadd.s32 %v155, 1
    %v160 = vsel %vm158, %v159, %v155
    %v161 = vadd.s32 %v156, %v160
    %v162 = vadd.s32 %v161, 536870912
    %v163 = vshrl.u32 %v162, 30
    %v164 = vshll.u32 %v163, 30
    %v165 = vsub.s32 %v161, %v164
    %vm166 = vcmp.lt.s32.totalorder %v165, 0
    %v167 = vsub.s32 0, %v165
    %v168 = vsel %vm166, %v167, %v165
    %v169 = vclz %v168
    %v170 = vsub.s32 %v169, 2
    %vm171 = vcmp.gt.s32.totalorder 0, %v170
    %v172 = vsel %vm171, 0, %v170
    %v173 = vsub.s32 32, %v172
    %v174 = vshll.u32 %v165, %v172
    %v175 = vshrl.u32 %v157, %v173
    %v176 = vor.u32 %v174, %v175
    %v177 = vsub.s32 4294967266, %v172
    %v178 = vadd.s32 %v177, 127
    %v179 = vshll.u32 %v178, 23
    %v180 = vor.u32 4788187, %v179
    %v181 = vand.u32 2147483647, %v180
    %v183 = vcvt.s32.f32 %v176
    %v184 = vmul.f32 %v183, %v181
    %v185 = vxor.u32 %v184, 2147483648
    %v186 = vsel %vm65, %v185, %v184
    %v187 = vsub.s32 4, %v163
    %v188 = vsel %vm65, %v187, %v163
    %v189 = vsel %vm64, %v39, %v186
    %v190 = vsel %vm64, 0, %v188
    %v191 = vmul.f32 %v189, %v189
    %v192 = vmul.f32 %v191, -0.001358992
    %v193 = vadd.f32 %v192, 0.041655596
    %v194 = vmul.f32 %v191, %v193
    %v195 = vadd.f32 %v194, -0.4999988
    %v196 = vmul.f32 %v191, %v195
    %v197 = vadd.f32 1.0, %v196
    %v198 = vmul.f32 %v189, %v189
    %v199 = vmul.f32 %v198, -0.00019511016
    %v200 = vadd.f32 %v199, 0.008332121
    %v201 = vmul.f32 %v198, %v200
    %v202 = vadd.f32 %v201, -0.16666654
    %v203 = vmul.f32 %v198, %v202
    %v204 = vadd.f32 %v203, 1.0
    %v205 = vmul.f32 %v204, %v189
    %vm206 = vweird.f32 %v39
    %v207 = vadd.s32 %v190, 3
    %v208 = vand.u32 %v207, 3
    %vm209 = vcmp.lt.s32.totalorder %v208, 2
    %vm210 = vcmp.eq.s32.totalorder %v208, 0
    %v211 = vxor.u32 %v205, 2147483648
    %v212 = vsel %vm210, %v197, %v211
    %vm213 = vcmp.eq.s32.totalorder %v208, 2
    %v214 = vxor.u32 %v197, 2147483648
    %v215 = vsel %vm213, %v214, %v205
    %v216 = vsel %vm209, %v212, %v215
    %v217 = vsel %vm206, nan, %v216
    %v218 = vsel %vm62, %v217, %v61
    %vm219 = vcmp.eq.s32.totalorder %v42, 1
    %v220 = vmul.f32 %v39, %v39
    %v221 = vsel %vm219, %v220, %v218
    %vm222 = vcmp.eq.s32.totalorder %v42, 0
    %v223 = vsel %vm222, %v39, %v221
    %vm224 = vcmask 60416
    %225 = vst.msk [vmem:[#allocation2] sm:$0xf] %vm224, %v223
    %v227 = vrot.slane %v39, 1
    %v229 = vmul.f32 %v39, %v227
    %vm230 = vcmask 61444
    %231 = vst.msk [vmem:[#allocation2] sm:$0x10] %vm230, %v229
    %v232 = vadd.f32 %v39, %v227
    %vm233 = vcmask 63494
    %234 = vst.msk [vmem:[#allocation2 - $0x1] sm:$0x40] %vm233, %v232
    // Predicated region
    $region10: #{tpu_custom_call.1} parent=1 // pred_check
      _
    $region11: #{tpu_custom_call.1} parent=1 // pred_check_branch
      %236 = sbr.rel (0) target = $region13
    $region12: #{tpu_custom_call.1} parent=1 // pred_region
      %238 = vsyncadd [#allocation3], 0
      %s240 = sshll.u32 [#allocation2], 4
      %s241 = int_to_ptr.vmem [resolvable:$true] %s240
      %s242 = sshll.u32 %s2, 4
      %s243 = int_to_ptr.hbm [resolvable:$true] %s242
      %245 = dma.vmem_to_hbm [thread:$0]  %s241, 128, %s243, [#allocation3]
    $region13: #{tpu_custom_call.1} parent=1 // pred_fallthru
      _
    // Predicated region
    $region14: #{tpu_custom_call.1} parent=1 // pred_check
      _
    $region15: #{tpu_custom_call.1} parent=1 // pred_check_branch
      %247 = sbr.rel (0) target = $region17
    $region16: #{tpu_custom_call.1} parent=1 // pred_region
      %249 = dma.done [#allocation3], 128
    $region17: #{tpu_custom_call.1} parent=1 // pred_fallthru
      _
    %250 = vsyncpa [#allocation3], 1

</llo_original>
